<compile_context>
chip_gen: v7x
topology: tpu7x:2x2x1
jax: 0.10.0
libtpu: 0.0.40
codegen_flags: <defaults>
</compile_context>

<pallas_src>
import jax
import jax.numpy as jnp
from jax.experimental import pallas as pl
from jax.experimental.pallas import tpu as pltpu


def mlp_kernel(x_ref, w1_ref, b1_ref, w2_ref, b2_ref, w3_ref, b3_ref, o_ref):
    # x_ref: [D, TB] (features on sublanes, batch on lanes)
    # wN_ref: [out, in] (PyTorch convention), bN_ref: [out, 1]
    xT = x_ref[...]
    # fc1 + relu : [H, D] @ [D, TB] -> [H, TB], f32 accumulate
    h1 = jnp.dot(w1_ref[...], xT, preferred_element_type=jnp.float32)
    h1 = jnp.maximum(h1 + b1_ref[...], 0.0)
    # fc2 + relu : [H, H] @ [H, TB] -> [H, TB]
    h2 = jnp.dot(w2_ref[...], h1.astype(w2_ref.dtype),
                 preferred_element_type=jnp.float32)
    h2 = jnp.maximum(h2 + b2_ref[...], 0.0)
    # fc3 + sigmoid : [1, H] @ [H, TB] -> [1, TB]  (lane-dense output row)
    logit = jnp.dot(w3_ref[...], h2.astype(w3_ref.dtype),
                    preferred_element_type=jnp.float32)
    o_ref[...] = jax.nn.sigmoid(logit + b3_ref[...]).astype(o_ref.dtype)


def mlp_forward(x, params, *, tile_b=512, compute_dtype=None):
    """x: [B, D] (row-major, like the PyTorch module). Returns [B, 1] f32.

    params = (w1, b1, w2, b2, w3, b3) with w: [out, in], b: [out, 1].
    compute_dtype: optionally cast x + weight matrices (MXU inputs) to bf16;
    biases / accumulation / elementwise math remain f32.
    """
    w1, b1, w2, b2, w3, b3 = params
    B, D = x.shape

    # Wrapper-side layout plumbing: batch-in-lanes.
    xT = x.T  # [D, B]
    if compute_dtype is not None:
        xT = xT.astype(compute_dtype)
        w1, w2, w3 = (w.astype(compute_dtype) for w in (w1, w2, w3))

    if B <= tile_b:
        # Single block equal to the full array: legal for any B, no padding.
        TB, Bp = B, B
    else:
        # Lane-dense tiles (tile_b is a multiple of 128); pad batch up.
        TB = tile_b
        Bp = pl.cdiv(B, TB) * TB
        if Bp != B:
            xT = jnp.pad(xT, ((0, 0), (0, Bp - B)))

    grid = (Bp // TB,)

    def resident(shape):
        # Same block index every grid step -> stays VMEM-resident (no re-DMA).
        return pl.BlockSpec(shape, lambda i: (0, 0))

    out = pl.pallas_call(
        mlp_kernel,
        out_shape=jax.ShapeDtypeStruct((1, Bp), jnp.float32),
        grid_spec=pltpu.PrefetchScalarGridSpec(
            num_scalar_prefetch=0,
            grid=grid,
            in_specs=[
                pl.BlockSpec((D, TB), lambda i: (0, i)),  # streamed x tile
                resident(w1.shape), resident(b1.shape),
                resident(w2.shape), resident(b2.shape),
                resident(w3.shape), resident(b3.shape),
            ],
            out_specs=pl.BlockSpec((1, TB), lambda i: (0, i)),
        ),
        compiler_params=pltpu.CompilerParams(
            dimension_semantics=("parallel",),
        ),
    )(xT, w1, b1, w2, b2, w3, b3)

    return out[:, :B].T  # back to [B, 1]


def init_params(key, input_dim, hidden_dim=36):
    """Deterministic PyTorch-style (uniform +/- 1/sqrt(fan_in)) init.

    Weights are [out, in] (PyTorch convention), biases are [out, 1] columns.
    """
    def linear(key, fan_in, fan_out):
        kw, kb = jax.random.split(key)
        bound = 1.0 / jnp.sqrt(jnp.float32(fan_in))
        w = jax.random.uniform(kw, (fan_out, fan_in), jnp.float32, -bound, bound)
        b = jax.random.uniform(kb, (fan_out, 1), jnp.float32, -bound, bound)
        return w, b

    k1, k2, k3 = jax.random.split(key, 3)
    w1, b1 = linear(k1, input_dim, hidden_dim)
    w2, b2 = linear(k2, hidden_dim, hidden_dim)
    w3, b3 = linear(k3, hidden_dim, 1)
    return (w1, b1, w2, b2, w3, b3)


def mlp_reference(x, params):
    w1, b1, w2, b2, w3, b3 = params
    h1 = jax.nn.relu(x @ w1.T + b1.T)
    h2 = jax.nn.relu(h1 @ w2.T + b2.T)
    return jax.nn.sigmoid(h2 @ w3.T + b3.T)


if __name__ == "__main__":
    key = jax.random.PRNGKey(0)
    kx, kp = jax.random.split(key)

    # Small, CartPole-style shapes (matches the PyTorch module defaults).
    batch, input_dim, hidden_dim = 8, 4, 36
    x = jax.random.normal(kx, (batch, input_dim), jnp.float32)
    params = init_params(kp, input_dim, hidden_dim)

    out = jax.block_until_ready(mlp_forward(x, params))
    ref = mlp_reference(x, params)
    assert out.shape == (batch, 1)
    assert jnp.allclose(out, ref, atol=1e-5, rtol=1e-5)

    # Exercise the tiled/pipelined path (grid > 1, batch padding, resident
    # weights) plus bf16 MXU inputs with f32 accumulation / elementwise.
    big_batch = 1000  # deliberately not a multiple of the 512-lane tile
    xb = jax.random.normal(jax.random.PRNGKey(1), (big_batch, input_dim),
                           jnp.float32)
    out_b = jax.block_until_ready(
        mlp_forward(xb, params, tile_b=512, compute_dtype=jnp.bfloat16))
    ref_b = mlp_reference(xb, params)
    assert out_b.shape == (big_batch, 1)
    assert jnp.allclose(out_b, ref_b, atol=2e-2, rtol=2e-2)

    print("KERNEL_OK")
</pallas_src>

<mosaic_0001>
module attributes {stable_mosaic.version = 11 : i64} {
  func.func @mlp_kernel(%arg0: i32, %arg1: memref<4x8xf32, #tpu.memory_space<vmem>>, %arg2: memref<36x4xf32, #tpu.memory_space<vmem>>, %arg3: memref<36x1xf32, #tpu.memory_space<vmem>>, %arg4: memref<36x36xf32, #tpu.memory_space<vmem>>, %arg5: memref<36x1xf32, #tpu.memory_space<vmem>>, %arg6: memref<1x36xf32, #tpu.memory_space<vmem>>, %arg7: memref<1x1xf32, #tpu.memory_space<vmem>>, %arg8: memref<1x8xf32, #tpu.memory_space<vmem>>) attributes {dimension_semantics = [#tpu.dimension_semantics<parallel>], iteration_bounds = array<i64: 1>, scalar_prefetch = 0 : i64, scratch_operands = 0 : i64, tpu.core_type = #tpu.core_type<tc>, window_params = [{transform_indices = @transform_0, window_bounds = array<i64: 4, 8>}, {pipeline_mode = #tpu.pipeline_mode<synchronous>, transform_indices = @transform_1, window_bounds = array<i64: 36, 4>}, {pipeline_mode = #tpu.pipeline_mode<synchronous>, transform_indices = @transform_2, window_bounds = array<i64: 36, 1>}, {pipeline_mode = #tpu.pipeline_mode<synchronous>, transform_indices = @transform_3, window_bounds = array<i64: 36, 36>}, {pipeline_mode = #tpu.pipeline_mode<synchronous>, transform_indices = @transform_4, window_bounds = array<i64: 36, 1>}, {pipeline_mode = #tpu.pipeline_mode<synchronous>, transform_indices = @transform_5, window_bounds = array<i64: 1, 36>}, {pipeline_mode = #tpu.pipeline_mode<synchronous>, transform_indices = @transform_6, window_bounds = array<i64: 1, 1>}, {transform_indices = @transform_7, window_bounds = array<i64: 1, 8>}]} {
    %c0 = arith.constant 0 : index
    %c0_0 = arith.constant 0 : index
    %0 = vector.load %arg1[%c0, %c0_0] : memref<4x8xf32, #tpu.memory_space<vmem>>, vector<4x8xf32>
    %c0_1 = arith.constant 0 : index
    %c0_2 = arith.constant 0 : index
    %1 = vector.load %arg2[%c0_1, %c0_2] : memref<36x4xf32, #tpu.memory_space<vmem>>, vector<36x4xf32>
    %cst = arith.constant dense<0.000000e+00> : vector<36x8xf32>
    %2 = tpu.matmul %1, %0, %cst {dimension_numbers = #tpu.dot_dimension_numbers<[1], [0], [0], [1], [0, 0, 1, 1], [], []>} : vector<36x4xf32>, vector<4x8xf32>, vector<36x8xf32> -> vector<36x8xf32>
    %c0_3 = arith.constant 0 : index
    %c0_4 = arith.constant 0 : index
    %3 = vector.load %arg3[%c0_3, %c0_4] : memref<36x1xf32, #tpu.memory_space<vmem>>, vector<36x1xf32>
    %4 = vector.broadcast %3 : vector<36x1xf32> to vector<36x8xf32>
    %5 = arith.addf %2, %4 : vector<36x8xf32>
    %cst_5 = arith.constant 0.000000e+00 : f32
    %6 = vector.broadcast %cst_5 : f32 to vector<36x8xf32>
    %7 = arith.maximumf %5, %6 : vector<36x8xf32>
    %c0_6 = arith.constant 0 : index
    %c0_7 = arith.constant 0 : index
    %8 = vector.load %arg4[%c0_6, %c0_7] : memref<36x36xf32, #tpu.memory_space<vmem>>, vector<36x36xf32>
    %cst_8 = arith.constant dense<0.000000e+00> : vector<36x8xf32>
    %9 = tpu.matmul %8, %7, %cst_8 {dimension_numbers = #tpu.dot_dimension_numbers<[1], [0], [0], [1], [0, 0, 1, 1], [], []>} : vector<36x36xf32>, vector<36x8xf32>, vector<36x8xf32> -> vector<36x8xf32>
    %c0_9 = arith.constant 0 : index
    %c0_10 = arith.constant 0 : index
    %10 = vector.load %arg5[%c0_9, %c0_10] : memref<36x1xf32, #tpu.memory_space<vmem>>, vector<36x1xf32>
    %11 = vector.broadcast %10 : vector<36x1xf32> to vector<36x8xf32>
    %12 = arith.addf %9, %11 : vector<36x8xf32>
    %cst_11 = arith.constant 0.000000e+00 : f32
    %13 = vector.broadcast %cst_11 : f32 to vector<36x8xf32>
    %14 = arith.maximumf %12, %13 : vector<36x8xf32>
    %c0_12 = arith.constant 0 : index
    %c0_13 = arith.constant 0 : index
    %15 = vector.load %arg6[%c0_12, %c0_13] : memref<1x36xf32, #tpu.memory_space<vmem>>, vector<1x36xf32>
    %cst_14 = arith.constant dense<0.000000e+00> : vector<1x8xf32>
    %16 = tpu.matmul %15, %14, %cst_14 {dimension_numbers = #tpu.dot_dimension_numbers<[1], [0], [0], [1], [0, 0, 1, 1], [], []>} : vector<1x36xf32>, vector<36x8xf32>, vector<1x8xf32> -> vector<1x8xf32>
    %c0_15 = arith.constant 0 : index
    %c0_16 = arith.constant 0 : index
    %17 = vector.load %arg7[%c0_15, %c0_16] : memref<1x1xf32, #tpu.memory_space<vmem>>, vector<1x1xf32>
    %18 = vector.broadcast %17 : vector<1x1xf32> to vector<1x8xf32>
    %19 = arith.addf %16, %18 : vector<1x8xf32>
    %20 = arith.negf %19 : vector<1x8xf32>
    %21 = math.exp %20 : vector<1x8xf32>
    %cst_17 = arith.constant 1.000000e+00 : f32
    %22 = vector.broadcast %cst_17 : f32 to vector<1x8xf32>
    %23 = arith.addf %22, %21 : vector<1x8xf32>
    %24 = arith.divf %22, %23 : vector<1x8xf32>
    %c0_18 = arith.constant 0 : index
    %c0_19 = arith.constant 0 : index
    %25 = vector.load %arg8[%c0_18, %c0_19] : memref<1x8xf32, #tpu.memory_space<vmem>>, vector<1x8xf32>
    tpu.vector_store %arg8[%c0_18, %c0_19], %24 {strides = array<i32>} : memref<1x8xf32, #tpu.memory_space<vmem>>, vector<1x8xf32>,
    return
  }
  func.func @transform_0(%arg0: i32) -> (i32, i32) {
    %c0_i32 = arith.constant 0 : i32
    %c0_i32_0 = arith.constant 0 : i32
    return %c0_i32, %arg0 : i32, i32
  }
  func.func @transform_1(%arg0: i32) -> (i32, i32) {
    %c0_i32 = arith.constant 0 : i32
    %c0_i32_0 = arith.constant 0 : i32
    %c0_i32_1 = arith.constant 0 : i32
    return %c0_i32, %c0_i32_0 : i32, i32
  }
  func.func @transform_2(%arg0: i32) -> (i32, i32) {
    %c0_i32 = arith.constant 0 : i32
    %c0_i32_0 = arith.constant 0 : i32
    %c0_i32_1 = arith.constant 0 : i32
    return %c0_i32, %c0_i32_0 : i32, i32
  }
  func.func @transform_3(%arg0: i32) -> (i32, i32) {
    %c0_i32 = arith.constant 0 : i32
    %c0_i32_0 = arith.constant 0 : i32
    %c0_i32_1 = arith.constant 0 : i32
    return %c0_i32, %c0_i32_0 : i32, i32
  }
  func.func @transform_4(%arg0: i32) -> (i32, i32) {
    %c0_i32 = arith.constant 0 : i32
    %c0_i32_0 = arith.constant 0 : i32
    %c0_i32_1 = arith.constant 0 : i32
    return %c0_i32, %c0_i32_0 : i32, i32
  }
  func.func @transform_5(%arg0: i32) -> (i32, i32) {
    %c0_i32 = arith.constant 0 : i32
    %c0_i32_0 = arith.constant 0 : i32
    %c0_i32_1 = arith.constant 0 : i32
    return %c0_i32, %c0_i32_0 : i32, i32
  }
  func.func @transform_6(%arg0: i32) -> (i32, i32) {
    %c0_i32 = arith.constant 0 : i32
    %c0_i32_0 = arith.constant 0 : i32
    %c0_i32_1 = arith.constant 0 : i32
    return %c0_i32, %c0_i32_0 : i32, i32
  }
  func.func @transform_7(%arg0: i32) -> (i32, i32) {
    %c0_i32 = arith.constant 0 : i32
    %c0_i32_0 = arith.constant 0 : i32
    return %c0_i32, %arg0 : i32, i32
  }
}

</mosaic_0001>

<llo_original>
// kernel: tpu_custom_call.1
$region0: #{tpu_custom_call.1}
  #allocation0 [shape = 'u32[]', space=smem, size = 0x4, offset = 0x4, fixed_abs, tag = 'smem constant byte address 0x4 - core index']
  #allocation1 [shape = 'u32[144,128]{1,0:T(1,128)}', space=vmem, size = 0x12000, scoped, tag = 'internal scratch']
  #allocation2 [shape = 'f32[1,1]{1,0:T(1,128)S(1)}', space=vmem, size = 0x200, scoped, tag = 'scoped memory for tpu_custom_call.1']
  %s0 = inlined_call_operand.vmem [shape: f32[4,8], index: 0, kind: input, shape index: {}]
  %s1 = inlined_call_operand.vmem [shape: f32[36,4], index: 1, kind: input, shape index: {}]
  %s2 = inlined_call_operand.vmem [shape: f32[36,1], index: 2, kind: input, shape index: {}]
  %s3 = inlined_call_operand.vmem [shape: f32[36,36], index: 3, kind: input, shape index: {}]
  %s4 = inlined_call_operand.vmem [shape: f32[36,1], index: 4, kind: input, shape index: {}]
  %s5 = inlined_call_operand.vmem [shape: f32[1,36], index: 5, kind: input, shape index: {}]
  %s6 = inlined_call_operand.<no memory space> [shape: f32[1,1], index: 6, kind: input, shape index: {}]
  %s7 = inlined_call_operand.hbm [shape: f32[1,8], index: 7, kind: output, shape index: {}]
  %s8 = sld [smem:[#allocation0]]
  $region38: #{tpu_custom_call.1} parent=0
    _
  %s10 = ssub.s32 1, %s8
  %s11 = scalar_select 0, %s10, %s8
  %v12 = vstv %s6
  %13 = vst [vmem:[#allocation2] sm:$0x1] %v12
  $region1: #{tpu_custom_call.1} parent=0
    #allocation3 [shape = 'u8[512]{0}', space=vmem, size = 0x400, scoped, tag = 'output window, operand 0, single buffered']
    #allocation4 [shape = 's32[1]{0}', space=sflag, size = 0x4, scoped, tag = 'scoped memory for tpu_custom_call.1']
    %14 = vsyncpa [#allocation4], 0
    // Predicated region
    $region2: #{tpu_custom_call.1} parent=1 // pred_check
      _
    $region3: #{tpu_custom_call.1} parent=1 // pred_check_branch
      %16 = sbr.rel (0) target = $region5
    $region4: #{tpu_custom_call.1} parent=1 // pred_region
      _
    $region5: #{tpu_custom_call.1} parent=1 // pred_fallthru
      _
    // Predicated region
    $region6: #{tpu_custom_call.1} parent=1 // pred_check
      _
    $region7: #{tpu_custom_call.1} parent=1 // pred_check_branch
      %18 = sbr.rel (0) target = $region9
    $region8: #{tpu_custom_call.1} parent=1 // pred_region
      _
    $region9: #{tpu_custom_call.1} parent=1 // pred_fallthru
      _
    // Predicated region
    $region10: #{tpu_custom_call.1} parent=1 // pred_check
      _
    $region11: #{tpu_custom_call.1} parent=1 // pred_check_branch
      %20 = sbr.rel (0) target = $region13
    $region12: #{tpu_custom_call.1} parent=1 // pred_region
      _
    $region13: #{tpu_custom_call.1} parent=1 // pred_fallthru
      _
    // Predicated region
    $region14: #{tpu_custom_call.1} parent=1 // pred_check
      _
    $region15: #{tpu_custom_call.1} parent=1 // pred_check_branch
      %22 = sbr.rel (0) target = $region17
    $region16: #{tpu_custom_call.1} parent=1 // pred_region
      _
    $region17: #{tpu_custom_call.1} parent=1 // pred_fallthru
      _
    // Predicated region
    $region18: #{tpu_custom_call.1} parent=1 // pred_check
      _
    $region19: #{tpu_custom_call.1} parent=1 // pred_check_branch
      %24 = sbr.rel (0) target = $region21
    $region20: #{tpu_custom_call.1} parent=1 // pred_region
      _
    $region21: #{tpu_custom_call.1} parent=1 // pred_fallthru
      _
    // Predicated region
    $region22: #{tpu_custom_call.1} parent=1 // pred_check
      _
    $region23: #{tpu_custom_call.1} parent=1 // pred_check_branch
      %26 = sbr.rel (0) target = $region25
    $region24: #{tpu_custom_call.1} parent=1 // pred_region
      _
    $region25: #{tpu_custom_call.1} parent=1 // pred_fallthru
      _
    // Predicated region
    $region26: #{tpu_custom_call.1} parent=1 // pred_check
      _
    $region27: #{tpu_custom_call.1} parent=1 // pred_check_branch
      %28 = sbr.rel (0) target = $region29
    $region28: #{tpu_custom_call.1} parent=1 // pred_region
      _
    $region29: #{tpu_custom_call.1} parent=1 // pred_fallthru
      _
    %v29 = vld [vmem:[%s0] sm:$0xf]
    %v30 = vld [vmem:[%s1] sm:$0xff]
    %v31 = vld [vmem:[%s1 + $0x8] sm:$0xff]
    %v32 = vld [vmem:[%s1 + $0x10] sm:$0xff]
    %v33 = vld [vmem:[%s1 + $0x18] sm:$0xff]
    %v34 = vld [vmem:[%s1 + $0x20] sm:$0xf]
    %v35 = vld [vmem:[%s2] sm:$0xff]
    %v36 = vld [vmem:[%s2 + $0x8] sm:$0xff]
    %v37 = vld [vmem:[%s2 + $0x10] sm:$0xff]
    %v38 = vld [vmem:[%s2 + $0x18] sm:$0xff]
    %v39 = vld [vmem:[%s2 + $0x20] sm:$0xf]
    %41 = vset.pattern.permute.xlu0 0
    %42 = vperm.xlu0 %41, %v35
    %v43 = vpop.permute.xlu0 %42
    %46 = vset.pattern.permute.xlu0 0
    %47 = vperm.xlu0 %46, %v36
    %v48 = vpop.permute.xlu0 %47
    %51 = vset.pattern.permute.xlu0 0
    %52 = vperm.xlu0 %51, %v37
    %v53 = vpop.permute.xlu0 %52
    %56 = vset.pattern.permute.xlu0 0
    %57 = vperm.xlu0 %56, %v38
    %v58 = vpop.permute.xlu0 %57
    %61 = vset.pattern.permute.xlu0 0
    %62 = vperm.xlu0 %61, %v39
    %v63 = vpop.permute.xlu0 %62
    %vm65 = vcmask 31744
    %v67 = vsel %vm65, %v30, 0
    %v70 = vsel %vm65, %v31, 0
    %v73 = vsel %vm65, %v32, 0
    %v76 = vsel %vm65, %v33, 0
    %v79 = vsel %vm65, %v34, 0
    %vm81 = vcmask 1043456
    %v83 = vsel %vm81, %v29, 0
    %85 = vmatprep.subr.mxu0 0.0
    %86 = vmatpush1.msra.mxu0 %v83
    %87 = vmatprep.subr.mxu0 0.0
    %88 = vmatpush1.msra.mxu0 0.0
    %89 = vmatprep.subr.mxu0 0.0
    %90 = vmatpush1.msra.mxu0 0.0
    %91 = vmatprep.subr.mxu0 0.0
    %92 = vmatpush1.msra.mxu0 0.0
    %93 = vmatprep.subr.mxu0 0.0
    %94 = vmatpush1.msra.mxu0 0.0
    %95 = vmatprep.subr.mxu0 0.0
    %96 = vmatpush1.msra.mxu0 0.0
    %97 = vmatprep.subr.mxu0 0.0
    %98 = vmatpush1.msra.mxu0 0.0
    %99 = vmatprep.subr.mxu0 0.0
    %100 = vmatpush1.msra.mxu0 0.0
    %101 = vmatprep.subr.mxu0 0.0
    %102 = vmatpush1.msra.mxu0 0.0
    %103 = vmatprep.subr.mxu0 0.0
    %104 = vmatpush1.msra.mxu0 0.0
    %105 = vmatprep.subr.mxu0 0.0
    %106 = vmatpush1.msra.mxu0 0.0
    %107 = vmatprep.subr.mxu0 0.0
    %108 = vmatpush1.msra.mxu0 0.0
    %109 = vmatprep.subr.mxu0 0.0
    %110 = vmatpush1.msra.mxu0 0.0
    %111 = vmatprep.subr.mxu0 0.0
    %112 = vmatpush1.msra.mxu0 0.0
    %113 = vmatprep.subr.mxu0 0.0
    %114 = vmatpush1.msra.mxu0 0.0
    %115 = vmatprep.subr.mxu0 0.0
    %116 = vmatpush1.msra.mxu0 0.0
    %117 = vmatprep.subr.mxu0 0.0
    %118 = vmatpush1.msra.mxu0 0.0
    %119 = vmatprep.subr.mxu0 0.0
    %120 = vmatpush1.msra.mxu0 0.0
    %121 = vmatprep.subr.mxu0 0.0
    %122 = vmatpush1.msra.mxu0 0.0
    %123 = vmatprep.subr.mxu0 0.0
    %124 = vmatpush1.msra.mxu0 0.0
    %125 = vmatprep.subr.mxu0 0.0
    %126 = vmatpush1.msra.mxu0 0.0
    %127 = vmatprep.subr.mxu0 0.0
    %128 = vmatpush1.msra.mxu0 0.0
    %129 = vmatprep.subr.mxu0 0.0
    %130 = vmatpush1.msra.mxu0 0.0
    %131 = vmatprep.subr.mxu0 0.0
    %132 = vmatpush1.msra.mxu0 0.0
    %133 = vmatprep.subr.mxu0 0.0
    %134 = vmatpush1.msra.mxu0 0.0
    %135 = vmatprep.subr.mxu0 0.0
    %136 = vmatpush1.msra.mxu0 0.0
    %137 = vmatprep.subr.mxu0 0.0
    %138 = vmatpush1.msra.mxu0 0.0
    %139 = vmatprep.subr.mxu0 0.0
    %140 = vmatpush1.msra.mxu0 0.0
    %141 = vmatprep.subr.mxu0 0.0
    %142 = vmatpush1.msra.mxu0 0.0
    %143 = vmatprep.subr.mxu0 0.0
    %144 = vmatpush1.msra.mxu0 0.0
    %145 = vmatprep.subr.mxu0 0.0
    %146 = vmatpush1.msra.mxu0 0.0
    %147 = vmatprep.subr.mxu0 0.0
    %148 = vmatpush1.msra.mxu0 0.0
    %149 = vmatprep.mubr.f32.mxu0 0.0
    %150 = vmatmul.mubr.f32.gmra.mrb[0].mxu0 %v67
    %v151 = vpop.f32.mrb[0].mxu0
    %v152 = vadd.f32 %v43, %v151
    %v153 = vpop.f32.mrb[0].mxu0
    %154 = vmatprep.mubr.f32.mxu0 0.0
    %155 = vmatmul.mubr.f32.gmra.mrb[0].mxu0 %v70
    %v156 = vpop.f32.mrb[0].mxu0
    %v157 = vadd.f32 %v48, %v156
    %v158 = vpop.f32.mrb[0].mxu0
    %159 = vmatprep.mubr.f32.mxu0 0.0
    %160 = vmatmul.mubr.f32.gmra.mrb[0].mxu0 %v73
    %v161 = vpop.f32.mrb[0].mxu0
    %v162 = vadd.f32 %v53, %v161
    %v163 = vpop.f32.mrb[0].mxu0
    %164 = vmatprep.mubr.f32.mxu0 0.0
    %165 = vmatmul.mubr.f32.gmra.mrb[0].mxu0 %v76
    %v166 = vpop.f32.mrb[0].mxu0
    %v167 = vadd.f32 %v58, %v166
    %v168 = vpop.f32.mrb[0].mxu0
    %169 = vmatprep.mubr.f32.mxu0 0.0
    %170 = vmatmul.mubr.f32.gmra.mrb[0].mxu0 %v79
    %v171 = vpop.f32.mrb[0].mxu0
    %v172 = vadd.f32 %v63, %v171
    %v173 = vpop.f32.mrb[0].mxu0
    %174 = vdwg.mxu0
    %v175 = vmax.f32 %v152, 0.0
    %v176 = vmax.f32 %v157, 0.0
    %v177 = vmax.f32 %v162, 0.0
    %v178 = vmax.f32 %v167, 0.0
    %v179 = vmax.f32 %v172, 0.0
    %v180 = vld [vmem:[%s3] sm:$0xff]
    %v181 = vld [vmem:[%s3 + $0x8] sm:$0xff]
    %v182 = vld [vmem:[%s3 + $0x10] sm:$0xff]
    %v183 = vld [vmem:[%s3 + $0x18] sm:$0xff]
    %v184 = vld [vmem:[%s3 + $0x20] sm:$0xf]
    %v185 = vld [vmem:[%s4] sm:$0xff]
    %v186 = vld [vmem:[%s4 + $0x8] sm:$0xff]
    %v187 = vld [vmem:[%s4 + $0x10] sm:$0xff]
    %v188 = vld [vmem:[%s4 + $0x18] sm:$0xff]
    %v189 = vld [vmem:[%s4 + $0x20] sm:$0xf]
    %191 = vset.pattern.permute.xlu0 0
    %192 = vperm.xlu0 %191, %v185
    %v193 = vpop.permute.xlu0 %192
    %196 = vset.pattern.permute.xlu0 0
    %197 = vperm.xlu0 %196, %v186
    %v198 = vpop.permute.xlu0 %197
    %201 = vset.pattern.permute.xlu0 0
    %202 = vperm.xlu0 %201, %v187
    %v203 = vpop.permute.xlu0 %202
    %206 = vset.pattern.permute.xlu0 0
    %207 = vperm.xlu0 %206, %v188
    %v208 = vpop.permute.xlu0 %207
    %211 = vset.pattern.permute.xlu0 0
    %212 = vperm.xlu0 %211, %v189
    %v213 = vpop.permute.xlu0 %212
    %vm215 = vcmask 293888
    %v217 = vsel %vm215, %v180, 0
    %v220 = vsel %vm215, %v181, 0
    %v223 = vsel %vm215, %v182, 0
    %v226 = vsel %vm215, %v183, 0
    %v229 = vsel %vm215, %v184, 0
    %v232 = vsel %vm81, %v179, 0
    %234 = vmatprep.subr.mxu0 0.0
    %235 = vmatpush1.msra.mxu0 %v175
    %236 = vmatprep.subr.mxu0 0.0
    %237 = vmatpush1.msra.mxu0 %v176
    %238 = vmatprep.subr.mxu0 0.0
    %239 = vmatpush1.msra.mxu0 %v177
    %240 = vmatprep.subr.mxu0 0.0
    %241 = vmatpush1.msra.mxu0 %v178
    %242 = vmatprep.subr.mxu0 0.0
    %243 = vmatpush1.msra.mxu0 %v232
    %244 = vmatprep.subr.mxu0 0.0
    %245 = vmatpush1.msra.mxu0 0.0
    %246 = vmatprep.subr.mxu0 0.0
    %247 = vmatpush1.msra.mxu0 0.0
    %248 = vmatprep.subr.mxu0 0.0
    %249 = vmatpush1.msra.mxu0 0.0
    %250 = vmatprep.subr.mxu0 0.0
    %251 = vmatpush1.msra.mxu0 0.0
    %252 = vmatprep.subr.mxu0 0.0
    %253 = vmatpush1.msra.mxu0 0.0
    %254 = vmatprep.subr.mxu0 0.0
    %255 = vmatpush1.msra.mxu0 0.0
    %256 = vmatprep.subr.mxu0 0.0
    %257 = vmatpush1.msra.mxu0 0.0
    %258 = vmatprep.subr.mxu0 0.0
    %259 = vmatpush1.msra.mxu0 0.0
    %260 = vmatprep.subr.mxu0 0.0
    %261 = vmatpush1.msra.mxu0 0.0
    %262 = vmatprep.subr.mxu0 0.0
    %263 = vmatpush1.msra.mxu0 0.0
    %264 = vmatprep.subr.mxu0 0.0
    %265 = vmatpush1.msra.mxu0 0.0
    %266 = vmatprep.subr.mxu0 0.0
    %267 = vmatpush1.msra.mxu0 0.0
    %268 = vmatprep.subr.mxu0 0.0
    %269 = vmatpush1.msra.mxu0 0.0
    %270 = vmatprep.subr.mxu0 0.0
    %271 = vmatpush1.msra.mxu0 0.0
    %272 = vmatprep.subr.mxu0 0.0
    %273 = vmatpush1.msra.mxu0 0.0
    %274 = vmatprep.subr.mxu0 0.0
    %275 = vmatpush1.msra.mxu0 0.0
    %276 = vmatprep.subr.mxu0 0.0
    %277 = vmatpush1.msra.mxu0 0.0
    %278 = vmatprep.subr.mxu0 0.0
    %279 = vmatpush1.msra.mxu0 0.0
    %280 = vmatprep.subr.mxu0 0.0
    %281 = vmatpush1.msra.mxu0 0.0
    %282 = vmatprep.subr.mxu0 0.0
    %283 = vmatpush1.msra.mxu0 0.0
    %284 = vmatprep.subr.mxu0 0.0
    %285 = vmatpush1.msra.mxu0 0.0
    %286 = vmatprep.subr.mxu0 0.0
    %287 = vmatpush1.msra.mxu0 0.0
    %288 = vmatprep.subr.mxu0 0.0
    %289 = vmatpush1.msra.mxu0 0.0
    %290 = vmatprep.subr.mxu0 0.0
    %291 = vmatpush1.msra.mxu0 0.0
    %292 = vmatprep.subr.mxu0 0.0
    %293 = vmatpush1.msra.mxu0 0.0
    %294 = vmatprep.subr.mxu0 0.0
    %295 = vmatpush1.msra.mxu0 0.0
    %296 = vmatprep.subr.mxu0 0.0
    %297 = vmatpush1.msra.mxu0 0.0
    %298 = vmatprep.mubr.f32.mxu0 0.0
    %299 = vmatmul.mubr.f32.gmra.mrb[0].mxu0 %v217
    %v300 = vpop.f32.mrb[0].mxu0
    %v301 = vadd.f32 %v193, %v300
    %v302 = vpop.f32.mrb[0].mxu0
    %303 = vmatprep.mubr.f32.mxu0 0.0
    %304 = vmatmul.mubr.f32.gmra.mrb[0].mxu0 %v220
    %v305 = vpop.f32.mrb[0].mxu0
    %v306 = vadd.f32 %v198, %v305
    %v307 = vpop.f32.mrb[0].mxu0
    %308 = vmatprep.mubr.f32.mxu0 0.0
    %309 = vmatmul.mubr.f32.gmra.mrb[0].mxu0 %v223
    %v310 = vpop.f32.mrb[0].mxu0
    %v311 = vadd.f32 %v203, %v310
    %v312 = vpop.f32.mrb[0].mxu0
    %313 = vmatprep.mubr.f32.mxu0 0.0
    %314 = vmatmul.mubr.f32.gmra.mrb[0].mxu0 %v226
    %v315 = vpop.f32.mrb[0].mxu0
    %v316 = vadd.f32 %v208, %v315
    %v317 = vpop.f32.mrb[0].mxu0
    %318 = vmatprep.mubr.f32.mxu0 0.0
    %319 = vmatmul.mubr.f32.gmra.mrb[0].mxu0 %v229
    %v320 = vpop.f32.mrb[0].mxu0
    %v321 = vadd.f32 %v213, %v320
    %v322 = vpop.f32.mrb[0].mxu0
    %323 = vdwg.mxu0
    %v324 = vmax.f32 %v301, 0.0
    %v325 = vmax.f32 %v306, 0.0
    %v326 = vmax.f32 %v311, 0.0
    %v327 = vmax.f32 %v316, 0.0
    %v328 = vmax.f32 %v321, 0.0
    %v329 = vld [vmem:[%s5] sm:$0x1]
    %v330 = vld [vmem:[#allocation2] sm:$0x1]
    %332 = vset.pattern.permute.xlu0 0
    %333 = vperm.xlu0 %332, %v330
    %v334 = vpop.permute.xlu0 %333
    %v336 = vlaneseq
    %v337 = vshrl.u32 %v336, 7
    %v338 = vsub.s32 0, %v337
    %v339 = vrot.slane %v334, %v338
    %v341 = vsel %vm215, %v329, 0
    %v344 = vsel %vm81, %v328, 0
    %346 = vmatprep.subr.mxu0 0.0
    %347 = vmatpush1.msra.mxu0 %v324
    %348 = vmatprep.subr.mxu0 0.0
    %349 = vmatpush1.msra.mxu0 %v325
    %350 = vmatprep.subr.mxu0 0.0
    %351 = vmatpush1.msra.mxu0 %v326
    %352 = vmatprep.subr.mxu0 0.0
    %353 = vmatpush1.msra.mxu0 %v327
    %354 = vmatprep.subr.mxu0 0.0
    %355 = vmatpush1.msra.mxu0 %v344
    %356 = vmatprep.subr.mxu0 0.0
    %357 = vmatpush1.msra.mxu0 0.0
    %358 = vmatprep.subr.mxu0 0.0
    %359 = vmatpush1.msra.mxu0 0.0
    %360 = vmatprep.subr.mxu0 0.0
    %361 = vmatpush1.msra.mxu0 0.0
    %362 = vmatprep.subr.mxu0 0.0
    %363 = vmatpush1.msra.mxu0 0.0
    %364 = vmatprep.subr.mxu0 0.0
    %365 = vmatpush1.msra.mxu0 0.0
    %366 = vmatprep.subr.mxu0 0.0
    %367 = vmatpush1.msra.mxu0 0.0
    %368 = vmatprep.subr.mxu0 0.0
    %369 = vmatpush1.msra.mxu0 0.0
    %370 = vmatprep.subr.mxu0 0.0
    %371 = vmatpush1.msra.mxu0 0.0
    %372 = vmatprep.subr.mxu0 0.0
    %373 = vmatpush1.msra.mxu0 0.0
    %374 = vmatprep.subr.mxu0 0.0
    %375 = vmatpush1.msra.mxu0 0.0
    %376 = vmatprep.subr.mxu0 0.0
    %377 = vmatpush1.msra.mxu0 0.0
    %378 = vmatprep.subr.mxu0 0.0
    %379 = vmatpush1.msra.mxu0 0.0
    %380 = vmatprep.subr.mxu0 0.0
    %381 = vmatpush1.msra.mxu0 0.0
    %382 = vmatprep.subr.mxu0 0.0
    %383 = vmatpush1.msra.mxu0 0.0
    %384 = vmatprep.subr.mxu0 0.0
    %385 = vmatpush1.msra.mxu0 0.0
    %386 = vmatprep.subr.mxu0 0.0
    %387 = vmatpush1.msra.mxu0 0.0
    %388 = vmatprep.subr.mxu0 0.0
    %389 = vmatpush1.msra.mxu0 0.0
    %390 = vmatprep.subr.mxu0 0.0
    %391 = vmatpush1.msra.mxu0 0.0
    %392 = vmatprep.subr.mxu0 0.0
    %393 = vmatpush1.msra.mxu0 0.0
    %394 = vmatprep.subr.mxu0 0.0
    %395 = vmatpush1.msra.mxu0 0.0
    %396 = vmatprep.subr.mxu0 0.0
    %397 = vmatpush1.msra.mxu0 0.0
    %398 = vmatprep.subr.mxu0 0.0
    %399 = vmatpush1.msra.mxu0 0.0
    %400 = vmatprep.subr.mxu0 0.0
    %401 = vmatpush1.msra.mxu0 0.0
    %402 = vmatprep.subr.mxu0 0.0
    %403 = vmatpush1.msra.mxu0 0.0
    %404 = vmatprep.subr.mxu0 0.0
    %405 = vmatpush1.msra.mxu0 0.0
    %406 = vmatprep.subr.mxu0 0.0
    %407 = vmatpush1.msra.mxu0 0.0
    %408 = vmatprep.subr.mxu0 0.0
    %409 = vmatpush1.msra.mxu0 0.0
    %410 = vmatprep.mubr.f32.mxu0 0.0
    %411 = vmatmul.mubr.f32.gmra.mrb[0].mxu0 %v341
    %v412 = vpop.f32.mrb[0].mxu0
    %v413 = vadd.f32 %v339, %v412
    %v414 = vpop.f32.mrb[0].mxu0
    %415 = vdwg.mxu0
    %v416 = vxor.u32 %v413, 2147483648
    %v417 = vmul.f32 %v416, 1.442695
    %v418 = vpow.pop %v417
    %v419 = vadd.f32 %v418, 1.0
    %v420 = vrcp.pop %v419
    %v421 = vmul.f32 1.0, %v420
    %vm422 = vcmask 57344
    %423 = vst.msk [vmem:[#allocation3] sm:$0x1] %vm422, %v421
    // Predicated region
    $region30: #{tpu_custom_call.1} parent=1 // pred_check
      _
    $region31: #{tpu_custom_call.1} parent=1 // pred_check_branch
      %425 = sbr.rel (0) target = $region33
    $region32: #{tpu_custom_call.1} parent=1 // pred_region
      %s427 = ssub.s32 16, 16
      %428 = vsyncadd [#allocation4], %s427
      %s430 = sshll.u32 [#allocation3], 4
      %s431 = int_to_ptr.vmem [resolvable:$true] %s430
      %433 = dma.vmem_to_hbm [thread:$0]  %s431, 16, %s7, [#allocation4]
    $region33: #{tpu_custom_call.1} parent=1 // pred_fallthru
      _
    // Predicated region
    $region34: #{tpu_custom_call.1} parent=1 // pred_check
      _
    $region35: #{tpu_custom_call.1} parent=1 // pred_check_branch
      %435 = sbr.rel (0) target = $region37
    $region36: #{tpu_custom_call.1} parent=1 // pred_region
      %436 = dma.done [#allocation4], 16
    $region37: #{tpu_custom_call.1} parent=1 // pred_fallthru
      _
    %437 = vsyncpa [#allocation4], 1

</llo_original>
